<compile_context>
chip_gen: v6e
topology: v6e:2x2x1
jax: 0.10.0
libtpu: 0.0.40
codegen_flags: <defaults>
</compile_context>

<pallas_src>
import functools

import jax
import jax.numpy as jnp
from jax.experimental import pallas as pl
from jax.experimental.pallas import tpu as pltpu

EPS = 1e-5          # nn.BatchNorm1d default eps
NEG_SLOPE = 0.2     # nn.LeakyReLU(0.2)
LANE = 128
SUBLANE = 8


def _round_up(n, m):
    return ((n + m - 1) // m) * m


def _fc_disc_kernel(n_hidden, x_ref, w_ref, vec_ref, out_ref):
    """Fused FCDiscriminator forward.

    x_ref  : (B, P)            zero-padded input activations (f32)
    w_ref  : (nW, P, P)        zero-padded hidden-layer weights, stored (in, out)
    vec_ref: (R, P)            row 2i = gamma_i, row 2i+1 = beta_i,
                               row 2*n_hidden = final weight row,
                               row 2*n_hidden+1 = final bias (lane 0)
    out_ref: (B, 1)
    """
    h = x_ref[...].astype(jnp.float32)

    for i in range(n_hidden):
        # Linear (hidden bias dropped: exactly cancelled by train-mode BN mean).
        h = jnp.dot(h, w_ref[i], preferred_element_type=jnp.float32)

        # BatchNorm1d, training mode (batch mean, biased batch variance),
        # fused affine:  h_norm = h*scale + shift.
        mean = jnp.mean(h, axis=0, keepdims=True)
        var = jnp.mean(h * h, axis=0, keepdims=True) - mean * mean
        gamma = vec_ref[2 * i:2 * i + 1, :]
        beta = vec_ref[2 * i + 1:2 * i + 2, :]
        scale = gamma * jax.lax.rsqrt(var + EPS)
        shift = beta - mean * scale
        h = h * scale + shift

        # LeakyReLU(0.2)
        h = jnp.where(h > 0, h, NEG_SLOPE * h)

    # Final Linear to 1 unit: VPU multiply + XLU lane reduction (no MXU pass
    # that would produce a single output column).
    w_last = vec_ref[2 * n_hidden:2 * n_hidden + 1, :]
    b_last = vec_ref[2 * n_hidden + 1:2 * n_hidden + 2, :]
    out = jnp.sum(h * w_last, axis=-1, keepdims=True) + b_last[:, :1]
    out_ref[...] = out.astype(out_ref.dtype)


@jax.jit
def fc_discriminator(x, params):
    """x: (B, feat_dim). params: flat list from init_params() (PyTorch-faithful:
    hidden biases are present but unused — they are a no-op through train-mode BN)."""
    n_hidden = (len(params) - 2) // 4
    hidden_ws = [params[4 * i] for i in range(n_hidden)]
    w_last = params[4 * n_hidden]          # (d_last_in, 1)
    b_last = params[4 * n_hidden + 1]      # (1, 1)

    B, feat_dim = x.shape
    P = _round_up(max([feat_dim] + [w.shape[1] for w in hidden_ws]), LANE)

    # Zero-padded, lane-aligned input.
    x_pad = jnp.zeros((B, P), jnp.float32).at[:, :feat_dim].set(x.astype(jnp.float32))

    # One slab for all hidden weights (zero-padded -> padded lanes stay exactly 0).
    n_w = max(n_hidden, 1)
    w_slab = jnp.zeros((n_w, P, P), jnp.float32)
    for i, w in enumerate(hidden_ws):
        w_slab = w_slab.at[i, :w.shape[0], :w.shape[1]].set(w.astype(jnp.float32))

    # One slab for all 1-D parameters: gamma/beta per hidden layer + final w row + bias.
    R = _round_up(2 * n_hidden + 2, SUBLANE)
    vec = jnp.zeros((R, P), jnp.float32)
    for i in range(n_hidden):
        g = params[4 * i + 2].reshape(-1)
        bt = params[4 * i + 3].reshape(-1)
        vec = vec.at[2 * i, :g.shape[0]].set(g.astype(jnp.float32))
        vec = vec.at[2 * i + 1, :bt.shape[0]].set(bt.astype(jnp.float32))
    vec = vec.at[2 * n_hidden, :w_last.shape[0]].set(w_last.reshape(-1).astype(jnp.float32))
    vec = vec.at[2 * n_hidden + 1, 0].set(b_last.reshape(()).astype(jnp.float32))

    kernel = functools.partial(_fc_disc_kernel, n_hidden)
    vmem = pl.BlockSpec(memory_space=pltpu.MemorySpace.VMEM)
    # NOTE: BN uses whole-batch statistics, so the batch is intentionally NOT tiled
    # over a grid.  For very large batches a two-pass / accumulator BN would be
    # needed before tiling (VMEM budget: 64 MiB on v7x, 128 MiB on v5e/v6e).
    return pl.pallas_call(
        kernel,
        out_shape=jax.ShapeDtypeStruct((B, 1), x.dtype),
        in_specs=[vmem, vmem, vmem],
        out_specs=vmem,
    )(x_pad, w_slab, vec)


def init_params(key, feat_dim, hdims):
    """PyTorch-faithful init: nn.Linear default U(-1/sqrt(fan_in), +) for w and b,
    BatchNorm1d default gamma=1, beta=0.  Weights stored as (in_dim, out_dim)."""
    dims = [feat_dim] + list(hdims) + [1]
    params = []
    n_layers = len(dims) - 1
    for i in range(n_layers):
        d_in, d_out = dims[i], dims[i + 1]
        key, kw, kb = jax.random.split(key, 3)
        bound = 1.0 / (d_in ** 0.5)
        w = jax.random.uniform(kw, (d_in, d_out), jnp.float32, -bound, bound)
        b = jax.random.uniform(kb, (1, d_out), jnp.float32, -bound, bound)
        params += [w, b]
        if i < n_layers - 1:
            params += [jnp.ones((1, d_out), jnp.float32),   # gamma
                       jnp.zeros((1, d_out), jnp.float32)]  # beta
    return params


def fc_discriminator_ref(x, params):
    """Pure-JAX reference matching the PyTorch forward exactly (training-mode BN,
    hidden biases included)."""
    n_hidden = (len(params) - 2) // 4
    h = x.astype(jnp.float32)
    idx = 0
    for _ in range(n_hidden):
        w, b, g, beta = params[idx:idx + 4]
        idx += 4
        h = h @ w + b
        mean = jnp.mean(h, axis=0, keepdims=True)
        var = jnp.mean((h - mean) ** 2, axis=0, keepdims=True)
        h = (h - mean) * jax.lax.rsqrt(var + EPS) * g + beta
        h = jnp.where(h > 0, h, NEG_SLOPE * h)
    w, b = params[idx], params[idx + 1]
    return (h @ w + b).astype(x.dtype)


if __name__ == "__main__":
    batch = 8
    feat_dim = 32
    hdims = [64, 32]

    key = jax.random.PRNGKey(0)
    key, kx = jax.random.split(key)
    x = jax.random.normal(kx, (batch, feat_dim), dtype=jnp.float32)
    params = init_params(key, feat_dim, hdims)

    out = fc_discriminator(x, params)
    out = jax.block_until_ready(out)

    ref = fc_discriminator_ref(x, params)
    assert out.shape == (batch, 1), out.shape
    assert jnp.allclose(out, ref, atol=5e-4, rtol=5e-4), (out, ref)

    print("KERNEL_OK")
</pallas_src>

<mosaic_0001>
module attributes {stable_mosaic.version = 11 : i64} {
  func.func @_fc_disc_kernel(%arg0: memref<8x128xf32, #tpu.memory_space<vmem>>, %arg1: memref<2x128x128xf32, #tpu.memory_space<vmem>>, %arg2: memref<8x128xf32, #tpu.memory_space<vmem>>, %arg3: memref<8x1xf32, #tpu.memory_space<vmem>>) attributes {dimension_semantics = [], scalar_prefetch = 0 : i64, scratch_operands = 0 : i64, tpu.core_type = #tpu.core_type<tc>} {
    %c0 = arith.constant 0 : index
    %c0_0 = arith.constant 0 : index
    %0 = vector.load %arg0[%c0, %c0_0] : memref<8x128xf32, #tpu.memory_space<vmem>>, vector<8x128xf32>
    %c0_1 = arith.constant 0 : index
    %c0_2 = arith.constant 0 : index
    %c0_3 = arith.constant 0 : index
    %1 = vector.load %arg1[%c0_1, %c0_2, %c0_3] : memref<2x128x128xf32, #tpu.memory_space<vmem>>, vector<1x128x128xf32>
    %2 = vector.shape_cast %1 : vector<1x128x128xf32> to vector<128x128xf32>
    %cst = arith.constant dense<0.000000e+00> : vector<8x128xf32>
    %3 = tpu.matmul %0, %2, %cst {dimension_numbers = #tpu.dot_dimension_numbers<[1], [0], [0], [1], [0, 0, 1, 1], [], []>} : vector<8x128xf32>, vector<128x128xf32>, vector<8x128xf32> -> vector<8x128xf32>
    %cst_4 = arith.constant dense<0.000000e+00> : vector<128xf32>
    %4 = vector.multi_reduction <add>, %3, %cst_4 [0] : vector<8x128xf32> to vector<128xf32>
    %5 = vector.shape_cast %4 : vector<128xf32> to vector<1x128xf32>
    %cst_5 = arith.constant 8.000000e+00 : f32
    %6 = vector.broadcast %cst_5 : f32 to vector<1x128xf32>
    %7 = arith.divf %5, %6 : vector<1x128xf32>
    %8 = arith.mulf %3, %3 : vector<8x128xf32>
    %cst_6 = arith.constant dense<0.000000e+00> : vector<128xf32>
    %9 = vector.multi_reduction <add>, %8, %cst_6 [0] : vector<8x128xf32> to vector<128xf32>
    %10 = vector.shape_cast %9 : vector<128xf32> to vector<1x128xf32>
    %cst_7 = arith.constant 8.000000e+00 : f32
    %11 = vector.broadcast %cst_7 : f32 to vector<1x128xf32>
    %12 = arith.divf %10, %11 : vector<1x128xf32>
    %13 = arith.mulf %7, %7 : vector<1x128xf32>
    %14 = arith.subf %12, %13 : vector<1x128xf32>
    %c0_8 = arith.constant 0 : index
    %c0_9 = arith.constant 0 : index
    %15 = vector.load %arg2[%c0_8, %c0_9] : memref<8x128xf32, #tpu.memory_space<vmem>>, vector<1x128xf32>
    %c1 = arith.constant 1 : index
    %c0_10 = arith.constant 0 : index
    %16 = vector.load %arg2[%c1, %c0_10] : memref<8x128xf32, #tpu.memory_space<vmem>>, vector<1x128xf32>
    %cst_11 = arith.constant 9.99999974E-6 : f32
    %17 = vector.broadcast %cst_11 : f32 to vector<1x128xf32>
    %18 = arith.addf %14, %17 : vector<1x128xf32>
    %19 = math.rsqrt %18 : vector<1x128xf32>
    %20 = arith.mulf %15, %19 : vector<1x128xf32>
    %21 = arith.mulf %7, %20 : vector<1x128xf32>
    %22 = arith.subf %16, %21 : vector<1x128xf32>
    %23 = vector.broadcast %20 : vector<1x128xf32> to vector<8x128xf32>
    %24 = arith.mulf %3, %23 : vector<8x128xf32>
    %25 = vector.broadcast %22 : vector<1x128xf32> to vector<8x128xf32>
    %26 = arith.addf %24, %25 : vector<8x128xf32>
    %cst_12 = arith.constant 0.000000e+00 : f32
    %27 = vector.broadcast %cst_12 : f32 to vector<8x128xf32>
    %28 = arith.cmpf ogt, %26, %27 : vector<8x128xf32>
    %cst_13 = arith.constant 2.000000e-01 : f32
    %29 = vector.broadcast %cst_13 : f32 to vector<8x128xf32>
    %30 = arith.mulf %29, %26 : vector<8x128xf32>
    %31 = arith.select %28, %26, %30 : vector<8x128xi1>, vector<8x128xf32>
    %c1_14 = arith.constant 1 : index
    %c0_15 = arith.constant 0 : index
    %c0_16 = arith.constant 0 : index
    %32 = vector.load %arg1[%c1_14, %c0_15, %c0_16] : memref<2x128x128xf32, #tpu.memory_space<vmem>>, vector<1x128x128xf32>
    %33 = vector.shape_cast %32 : vector<1x128x128xf32> to vector<128x128xf32>
    %cst_17 = arith.constant dense<0.000000e+00> : vector<8x128xf32>
    %34 = tpu.matmul %31, %33, %cst_17 {dimension_numbers = #tpu.dot_dimension_numbers<[1], [0], [0], [1], [0, 0, 1, 1], [], []>} : vector<8x128xf32>, vector<128x128xf32>, vector<8x128xf32> -> vector<8x128xf32>
    %cst_18 = arith.constant dense<0.000000e+00> : vector<128xf32>
    %35 = vector.multi_reduction <add>, %34, %cst_18 [0] : vector<8x128xf32> to vector<128xf32>
    %36 = vector.shape_cast %35 : vector<128xf32> to vector<1x128xf32>
    %cst_19 = arith.constant 8.000000e+00 : f32
    %37 = vector.broadcast %cst_19 : f32 to vector<1x128xf32>
    %38 = arith.divf %36, %37 : vector<1x128xf32>
    %39 = arith.mulf %34, %34 : vector<8x128xf32>
    %cst_20 = arith.constant dense<0.000000e+00> : vector<128xf32>
    %40 = vector.multi_reduction <add>, %39, %cst_20 [0] : vector<8x128xf32> to vector<128xf32>
    %41 = vector.shape_cast %40 : vector<128xf32> to vector<1x128xf32>
    %cst_21 = arith.constant 8.000000e+00 : f32
    %42 = vector.broadcast %cst_21 : f32 to vector<1x128xf32>
    %43 = arith.divf %41, %42 : vector<1x128xf32>
    %44 = arith.mulf %38, %38 : vector<1x128xf32>
    %45 = arith.subf %43, %44 : vector<1x128xf32>
    %c2 = arith.constant 2 : index
    %c0_22 = arith.constant 0 : index
    %46 = vector.load %arg2[%c2, %c0_22] : memref<8x128xf32, #tpu.memory_space<vmem>>, vector<1x128xf32>
    %c3 = arith.constant 3 : index
    %c0_23 = arith.constant 0 : index
    %47 = vector.load %arg2[%c3, %c0_23] : memref<8x128xf32, #tpu.memory_space<vmem>>, vector<1x128xf32>
    %cst_24 = arith.constant 9.99999974E-6 : f32
    %48 = vector.broadcast %cst_24 : f32 to vector<1x128xf32>
    %49 = arith.addf %45, %48 : vector<1x128xf32>
    %50 = math.rsqrt %49 : vector<1x128xf32>
    %51 = arith.mulf %46, %50 : vector<1x128xf32>
    %52 = arith.mulf %38, %51 : vector<1x128xf32>
    %53 = arith.subf %47, %52 : vector<1x128xf32>
    %54 = vector.broadcast %51 : vector<1x128xf32> to vector<8x128xf32>
    %55 = arith.mulf %34, %54 : vector<8x128xf32>
    %56 = vector.broadcast %53 : vector<1x128xf32> to vector<8x128xf32>
    %57 = arith.addf %55, %56 : vector<8x128xf32>
    %cst_25 = arith.constant 0.000000e+00 : f32
    %58 = vector.broadcast %cst_25 : f32 to vector<8x128xf32>
    %59 = arith.cmpf ogt, %57, %58 : vector<8x128xf32>
    %cst_26 = arith.constant 2.000000e-01 : f32
    %60 = vector.broadcast %cst_26 : f32 to vector<8x128xf32>
    %61 = arith.mulf %60, %57 : vector<8x128xf32>
    %62 = arith.select %59, %57, %61 : vector<8x128xi1>, vector<8x128xf32>
    %c4 = arith.constant 4 : index
    %c0_27 = arith.constant 0 : index
    %63 = vector.load %arg2[%c4, %c0_27] : memref<8x128xf32, #tpu.memory_space<vmem>>, vector<1x128xf32>
    %c5 = arith.constant 5 : index
    %c0_28 = arith.constant 0 : index
    %64 = vector.load %arg2[%c5, %c0_28] : memref<8x128xf32, #tpu.memory_space<vmem>>, vector<1x128xf32>
    %65 = vector.broadcast %63 : vector<1x128xf32> to vector<8x128xf32>
    %66 = arith.mulf %62, %65 : vector<8x128xf32>
    %cst_29 = arith.constant dense<0.000000e+00> : vector<8xf32>
    %67 = vector.multi_reduction <add>, %66, %cst_29 [1] : vector<8x128xf32> to vector<8xf32>
    %68 = vector.shape_cast %67 : vector<8xf32> to vector<8x1xf32>
    %69 = vector.extract_strided_slice %64 {offsets = [0, 0], sizes = [1, 1], strides = [1, 1]} : vector<1x128xf32> to vector<1x1xf32>
    %70 = vector.broadcast %69 : vector<1x1xf32> to vector<8x1xf32>
    %71 = arith.addf %68, %70 : vector<8x1xf32>
    %c0_30 = arith.constant 0 : index
    %c0_31 = arith.constant 0 : index
    %72 = vector.load %arg3[%c0_30, %c0_31] : memref<8x1xf32, #tpu.memory_space<vmem>>, vector<8x1xf32>
    tpu.vector_store %arg3[%c0_30, %c0_31], %71 {strides = array<i32>} : memref<8x1xf32, #tpu.memory_space<vmem>>, vector<8x1xf32>,
    return
  }
}

</mosaic_0001>

<llo_original>
// kernel: fc_discriminator.1
$region0: #{fc_discriminator.1}
  #allocation0 [shape = 'u32[]', space=smem, size = 0x4, offset = 0x4, fixed_abs, tag = 'smem constant byte address 0x4 - core index']
  #allocation1 [shape = 'u32[144,128]{1,0:T(1,128)}', space=vmem, size = 0x12000, scoped, tag = 'internal scratch']
  %s0 = inlined_call_operand.vmem [shape: f32[8,128], index: 0, kind: input, shape index: {}]
  %s1 = inlined_call_operand.vmem [shape: f32[2,128,128], index: 1, kind: input, shape index: {}]
  %s2 = inlined_call_operand.vmem [shape: f32[8,128], index: 2, kind: input, shape index: {}]
  %s3 = inlined_call_operand.vmem [shape: f32[8,1], index: 3, kind: output, shape index: {}]
  %s4 = sld [smem:[#allocation0]]
  $region22: #{fc_discriminator.1} parent=0
    _
  %s6 = ssub.s32 1, %s4
  %s7 = scalar_select 0, %s6, %s4
  // Predicated region
  $region2: #{fc_discriminator.1} parent=0 // pred_check
    _
  $region3: #{fc_discriminator.1} parent=0 // pred_check_branch
    %9 = sbr.rel (0) target = $region5
  $region4: #{fc_discriminator.1} parent=0 // pred_region
    _
  $region5: #{fc_discriminator.1} parent=0 // pred_fallthru
    _
  // Predicated region
  $region6: #{fc_discriminator.1} parent=0 // pred_check
    _
  $region7: #{fc_discriminator.1} parent=0 // pred_check_branch
    %11 = sbr.rel (0) target = $region9
  $region8: #{fc_discriminator.1} parent=0 // pred_region
    _
  $region9: #{fc_discriminator.1} parent=0 // pred_fallthru
    _
  // Predicated region
  $region10: #{fc_discriminator.1} parent=0 // pred_check
    _
  $region11: #{fc_discriminator.1} parent=0 // pred_check_branch
    %13 = sbr.rel (0) target = $region13
  $region12: #{fc_discriminator.1} parent=0 // pred_region
    _
  $region13: #{fc_discriminator.1} parent=0 // pred_fallthru
    _
  %v14 = vld [vmem:[%s0] sm:$0xff]
  %v15 = vld [vmem:[%s1] sm:$0xff]
  %v16 = vld [vmem:[%s1 + $0x8] sm:$0xff]
  %v17 = vld [vmem:[%s1 + $0x10] sm:$0xff]
  %v18 = vld [vmem:[%s1 + $0x18] sm:$0xff]
  %v19 = vld [vmem:[%s1 + $0x20] sm:$0xff]
  %v20 = vld [vmem:[%s1 + $0x28] sm:$0xff]
  %v21 = vld [vmem:[%s1 + $0x30] sm:$0xff]
  %v22 = vld [vmem:[%s1 + $0x38] sm:$0xff]
  %v23 = vld [vmem:[%s1 + $0x40] sm:$0xff]
  %v24 = vld [vmem:[%s1 + $0x48] sm:$0xff]
  %v25 = vld [vmem:[%s1 + $0x50] sm:$0xff]
  %v26 = vld [vmem:[%s1 + $0x58] sm:$0xff]
  %v27 = vld [vmem:[%s1 + $0x60] sm:$0xff]
  %v28 = vld [vmem:[%s1 + $0x68] sm:$0xff]
  %v29 = vld [vmem:[%s1 + $0x70] sm:$0xff]
  %v30 = vld [vmem:[%s1 + $0x78] sm:$0xff]
  %31 = vmatprep.subr.mxu0 0.0
  %32 = vmatpush1.msra.mxu0 %v30
  %33 = vmatprep.subr.mxu0 0.0
  %34 = vmatpush1.msra.mxu0 %v29
  %35 = vmatprep.subr.mxu0 0.0
  %36 = vmatpush1.msra.mxu0 %v28
  %37 = vmatprep.subr.mxu0 0.0
  %38 = vmatpush1.msra.mxu0 %v27
  %39 = vmatprep.subr.mxu0 0.0
  %40 = vmatpush1.msra.mxu0 %v26
  %41 = vmatprep.subr.mxu0 0.0
  %42 = vmatpush1.msra.mxu0 %v25
  %43 = vmatprep.subr.mxu0 0.0
  %44 = vmatpush1.msra.mxu0 %v24
  %45 = vmatprep.subr.mxu0 0.0
  %46 = vmatpush1.msra.mxu0 %v23
  %47 = vmatprep.subr.mxu0 0.0
  %48 = vmatpush1.msra.mxu0 %v22
  %49 = vmatprep.subr.mxu0 0.0
  %50 = vmatpush1.msra.mxu0 %v21
  %51 = vmatprep.subr.mxu0 0.0
  %52 = vmatpush1.msra.mxu0 %v20
  %53 = vmatprep.subr.mxu0 0.0
  %54 = vmatpush1.msra.mxu0 %v19
  %55 = vmatprep.subr.mxu0 0.0
  %56 = vmatpush1.msra.mxu0 %v18
  %57 = vmatprep.subr.mxu0 0.0
  %58 = vmatpush1.msra.mxu0 %v17
  %59 = vmatprep.subr.mxu0 0.0
  %60 = vmatpush1.msra.mxu0 %v16
  %61 = vmatprep.subr.mxu0 0.0
  %62 = vmatpush1.msra.mxu0 %v15
  %63 = vmatprep.subr.mxu0 0.0
  %64 = vmatpush2.msra.mxu0 0.0
  %65 = vmatprep.subr.mxu0 0.0
  %66 = vmatpush2.msra.mxu0 0.0
  %67 = vmatprep.subr.mxu0 0.0
  %68 = vmatpush2.msra.mxu0 0.0
  %69 = vmatprep.subr.mxu0 0.0
  %70 = vmatpush2.msra.mxu0 0.0
  %71 = vmatprep.subr.mxu0 0.0
  %72 = vmatpush2.msra.mxu0 0.0
  %73 = vmatprep.subr.mxu0 0.0
  %74 = vmatpush2.msra.mxu0 0.0
  %75 = vmatprep.subr.mxu0 0.0
  %76 = vmatpush2.msra.mxu0 0.0
  %77 = vmatprep.subr.mxu0 0.0
  %78 = vmatpush2.msra.mxu0 0.0
  %79 = vmatprep.subr.mxu0 0.0
  %80 = vmatpush2.msra.mxu0 0.0
  %81 = vmatprep.subr.mxu0 0.0
  %82 = vmatpush2.msra.mxu0 0.0
  %83 = vmatprep.subr.mxu0 0.0
  %84 = vmatpush2.msra.mxu0 0.0
  %85 = vmatprep.subr.mxu0 0.0
  %86 = vmatpush2.msra.mxu0 0.0
  %87 = vmatprep.subr.mxu0 0.0
  %88 = vmatpush2.msra.mxu0 0.0
  %89 = vmatprep.subr.mxu0 0.0
  %90 = vmatpush2.msra.mxu0 0.0
  %91 = vmatprep.subr.mxu0 0.0
  %92 = vmatpush2.msra.mxu0 0.0
  %93 = vmatprep.subr.mxu0 0.0
  %94 = vmatpush2.msra.mxu0 0.0
  %95 = vmatprep.mubr.f32.mxu0 0.0
  %96 = vmatmul.mubr.f32.gmra.mxu0 %v14
  %v97 = vpop.f32.mrf.mxu0
  %v98 = vadd.f32 0.0, %v97
  %v99 = vpop.f32.mrf.mxu0
  %100 = vdwg.mxu0
  %v101 = vrot.slane %v98, 4
  %v102 = vadd.f32 %v98, %v101
  %v103 = vrot.slane %v102, 2
  %v104 = vadd.f32 %v102, %v103
  %v105 = vrot.slane %v104, 1
  %v106 = vadd.f32 %v104, %v105
  %v107 = vrcp.pop 8.0
  %v108 = vmul.f32 %v106, %v107
  %v109 = vmul.f32 %v98, %v98
  %v110 = vrot.slane %v109, 4
  %v111 = vadd.f32 %v109, %v110
  %v112 = vrot.slane %v111, 2
  %v113 = vadd.f32 %v111, %v112
  %v114 = vrot.slane %v113, 1
  %v115 = vadd.f32 %v113, %v114
  %v116 = vmul.f32 %v115, %v107
  %v117 = vmul.f32 %v108, %v108
  %v118 = vsub.f32 %v116, %v117
  %v119 = vld [vmem:[%s2] sm:$0x1]
  %v120 = vld [vmem:[%s2 + $0x1] sm:$0x1]
  %v121 = vadd.f32 %v118, 1e-05
  %v122 = vrsqrt.pop %v121
  %v123 = vmul.f32 %v119, %v122
  %v124 = vmul.f32 %v108, %v123
  %v125 = vsub.f32 %v120, %v124
  %v126 = vlaneseq
  %v127 = vshrl.u32 %v126, 7
  %v128 = vsub.s32 0, %v127
  %v129 = vrot.slane %v123, %v128
  %v130 = vmul.f32 %v98, %v129
  %v131 = vlaneseq
  %v132 = vshrl.u32 %v131, 7
  %v133 = vsub.s32 0, %v132
  %v134 = vrot.slane %v125, %v133
  %v135 = vadd.f32 %v130, %v134
  %vm136 = vcmp.gt.f32.partialorder %v135, 0.0
  %v137 = vmul.f32 %v135, 0.2
  %v138 = vsel %vm136, %v135, %v137
  %s139 = scalar_lea.vmem %s1, 128
  %v140 = vld [vmem:[%s139] sm:$0xff]
  %v141 = vld [vmem:[%s139 + $0x8] sm:$0xff]
  %v142 = vld [vmem:[%s139 + $0x10] sm:$0xff]
  %v143 = vld [vmem:[%s139 + $0x18] sm:$0xff]
  %v144 = vld [vmem:[%s139 + $0x20] sm:$0xff]
  %v145 = vld [vmem:[%s139 + $0x28] sm:$0xff]
  %v146 = vld [vmem:[%s139 + $0x30] sm:$0xff]
  %v147 = vld [vmem:[%s139 + $0x38] sm:$0xff]
  %v148 = vld [vmem:[%s139 + $0x40] sm:$0xff]
  %v149 = vld [vmem:[%s139 + $0x48] sm:$0xff]
  %v150 = vld [vmem:[%s139 + $0x50] sm:$0xff]
  %v151 = vld [vmem:[%s139 + $0x58] sm:$0xff]
  %v152 = vld [vmem:[%s139 + $0x60] sm:$0xff]
  %v153 = vld [vmem:[%s139 + $0x68] sm:$0xff]
  %v154 = vld [vmem:[%s139 + $0x70] sm:$0xff]
  %v155 = vld [vmem:[%s139 + $0x78] sm:$0xff]
  %156 = vmatprep.subr.mxu0 0.0
  %157 = vmatpush1.msra.mxu0 %v155
  %158 = vmatprep.subr.mxu0 0.0
  %159 = vmatpush1.msra.mxu0 %v154
  %160 = vmatprep.subr.mxu0 0.0
  %161 = vmatpush1.msra.mxu0 %v153
  %162 = vmatprep.subr.mxu0 0.0
  %163 = vmatpush1.msra.mxu0 %v152
  %164 = vmatprep.subr.mxu0 0.0
  %165 = vmatpush1.msra.mxu0 %v151
  %166 = vmatprep.subr.mxu0 0.0
  %167 = vmatpush1.msra.mxu0 %v150
  %168 = vmatprep.subr.mxu0 0.0
  %169 = vmatpush1.msra.mxu0 %v149
  %170 = vmatprep.subr.mxu0 0.0
  %171 = vmatpush1.msra.mxu0 %v148
  %172 = vmatprep.subr.mxu0 0.0
  %173 = vmatpush1.msra.mxu0 %v147
  %174 = vmatprep.subr.mxu0 0.0
  %175 = vmatpush1.msra.mxu0 %v146
  %176 = vmatprep.subr.mxu0 0.0
  %177 = vmatpush1.msra.mxu0 %v145
  %178 = vmatprep.subr.mxu0 0.0
  %179 = vmatpush1.msra.mxu0 %v144
  %180 = vmatprep.subr.mxu0 0.0
  %181 = vmatpush1.msra.mxu0 %v143
  %182 = vmatprep.subr.mxu0 0.0
  %183 = vmatpush1.msra.mxu0 %v142
  %184 = vmatprep.subr.mxu0 0.0
  %185 = vmatpush1.msra.mxu0 %v141
  %186 = vmatprep.subr.mxu0 0.0
  %187 = vmatpush1.msra.mxu0 %v140
  %188 = vmatprep.subr.mxu0 0.0
  %189 = vmatpush2.msra.mxu0 0.0
  %190 = vmatprep.subr.mxu0 0.0
  %191 = vmatpush2.msra.mxu0 0.0
  %192 = vmatprep.subr.mxu0 0.0
  %193 = vmatpush2.msra.mxu0 0.0
  %194 = vmatprep.subr.mxu0 0.0
  %195 = vmatpush2.msra.mxu0 0.0
  %196 = vmatprep.subr.mxu0 0.0
  %197 = vmatpush2.msra.mxu0 0.0
  %198 = vmatprep.subr.mxu0 0.0
  %199 = vmatpush2.msra.mxu0 0.0
  %200 = vmatprep.subr.mxu0 0.0
  %201 = vmatpush2.msra.mxu0 0.0
  %202 = vmatprep.subr.mxu0 0.0
  %203 = vmatpush2.msra.mxu0 0.0
  %204 = vmatprep.subr.mxu0 0.0
  %205 = vmatpush2.msra.mxu0 0.0
  %206 = vmatprep.subr.mxu0 0.0
  %207 = vmatpush2.msra.mxu0 0.0
  %208 = vmatprep.subr.mxu0 0.0
  %209 = vmatpush2.msra.mxu0 0.0
  %210 = vmatprep.subr.mxu0 0.0
  %211 = vmatpush2.msra.mxu0 0.0
  %212 = vmatprep.subr.mxu0 0.0
  %213 = vmatpush2.msra.mxu0 0.0
  %214 = vmatprep.subr.mxu0 0.0
  %215 = vmatpush2.msra.mxu0 0.0
  %216 = vmatprep.subr.mxu0 0.0
  %217 = vmatpush2.msra.mxu0 0.0
  %218 = vmatprep.subr.mxu0 0.0
  %219 = vmatpush2.msra.mxu0 0.0
  %220 = vmatprep.mubr.f32.mxu0 0.0
  %221 = vmatmul.mubr.f32.gmra.mxu0 %v138
  %v222 = vpop.f32.mrf.mxu0
  %v223 = vadd.f32 0.0, %v222
  %v224 = vpop.f32.mrf.mxu0
  %225 = vdwg.mxu0
  %v226 = vrot.slane %v223, 4
  %v227 = vadd.f32 %v223, %v226
  %v228 = vrot.slane %v227, 2
  %v229 = vadd.f32 %v227, %v228
  %v230 = vrot.slane %v229, 1
  %v231 = vadd.f32 %v229, %v230
  %v232 = vmul.f32 %v231, %v107
  %v233 = vmul.f32 %v223, %v223
  %v234 = vrot.slane %v233, 4
  %v235 = vadd.f32 %v233, %v234
  %v236 = vrot.slane %v235, 2
  %v237 = vadd.f32 %v235, %v236
  %v238 = vrot.slane %v237, 1
  %v239 = vadd.f32 %v237, %v238
  %v240 = vmul.f32 %v239, %v107
  %v241 = vmul.f32 %v232, %v232
  %v242 = vsub.f32 %v240, %v241
  %v243 = vld [vmem:[%s2 + $0x2] sm:$0x1]
  %v244 = vld [vmem:[%s2 + $0x3] sm:$0x1]
  %v245 = vadd.f32 %v242, 1e-05
  %v246 = vrsqrt.pop %v245
  %v247 = vmul.f32 %v243, %v246
  %v248 = vmul.f32 %v232, %v247
  %v249 = vsub.f32 %v244, %v248
  %v250 = vlaneseq
  %v251 = vshrl.u32 %v250, 7
  %v252 = vsub.s32 0, %v251
  %v253 = vrot.slane %v247, %v252
  %v254 = vmul.f32 %v223, %v253
  %v255 = vlaneseq
  %v256 = vshrl.u32 %v255, 7
  %v257 = vsub.s32 0, %v256
  %v258 = vrot.slane %v249, %v257
  %v259 = vadd.f32 %v254, %v258
  %vm260 = vcmp.gt.f32.partialorder %v259, 0.0
  %v261 = vmul.f32 %v259, 0.2
  %v262 = vsel %vm260, %v259, %v261
  %v263 = vld [vmem:[%s2 + $0x4] sm:$0x1]
  %v264 = vld [vmem:[%s2 + $0x5] sm:$0x1]
  %v265 = vlaneseq
  %v266 = vshrl.u32 %v265, 7
  %v267 = vsub.s32 0, %v266
  %v268 = vrot.slane %v263, %v267
  %v269 = vmul.f32 %v262, %v268
  %270 = vadd.xlane.f32.xlu0 %v269
  %v271 = vpop.xlane.xlu0 %270
  %v272 = vlaneseq
  %v273 = vshrl.u32 %v272, 7
  %v274 = vsub.s32 0, %v273
  %v275 = vrot.slane %v264, %v274
  %v276 = vadd.f32 %v271, %v275
  %vm277 = vcmask 7168
  %278 = vst.msk [vmem:[%s3] sm:$0xff] %vm277, %v276
  // Predicated region
  $region14: #{fc_discriminator.1} parent=0 // pred_check
    _
  $region15: #{fc_discriminator.1} parent=0 // pred_check_branch
    %280 = sbr.rel (0) target = $region17
  $region16: #{fc_discriminator.1} parent=0 // pred_region
    _
  $region17: #{fc_discriminator.1} parent=0 // pred_fallthru
    _
  // Predicated region
  $region18: #{fc_discriminator.1} parent=0 // pred_check
    _
  $region19: #{fc_discriminator.1} parent=0 // pred_check_branch
    %282 = sbr.rel (0) target = $region21
  $region20: #{fc_discriminator.1} parent=0 // pred_region
    _
  $region21: #{fc_discriminator.1} parent=0 // pred_fallthru
    _

</llo_original>
